<compile_context>
chip_gen: v7x
topology: tpu7x:2x2x1
jax: 0.10.0
libtpu: 0.0.40
codegen_flags: <defaults>
</compile_context>

<pallas_src>
import jax
import jax.numpy as jnp
from jax.experimental import pallas as pl
from jax.experimental.pallas import tpu as pltpu


# ----------------------------------------------------------------------------
# Kernels (operate on NCL blocks)
# ----------------------------------------------------------------------------
def _bn_relu_conv_kernel(x_ref, sb_ref, w_ref, o_ref):
    # x_ref:  (1, C_in, TL)   input block (one batch element, one L tile)
    # sb_ref: (C_in, 2)       packed [scale, bias] (folded eval-mode BN), f32
    # w_ref:  (C_out, C_in)   conv1x1 weight, already in matmul dtype
    # o_ref:  (1, C_out, TL)
    x = x_ref[0].astype(jnp.float32)            # upcast in-kernel (cheap VPU filler)
    scale = sb_ref[:, 0:1]                      # (C_in, 1)
    bias = sb_ref[:, 1:2]                       # (C_in, 1)
    h = jnp.maximum(x * scale + bias, 0.0)      # BN + ReLU in f32 vregs
    o = jnp.dot(w_ref[...], h.astype(w_ref.dtype),
                preferred_element_type=jnp.float32)
    o_ref[0] = o.astype(o_ref.dtype)


def _bn_relu_kernel(x_ref, sb_ref, o_ref):
    # disable_conv branch: BN + ReLU only, stays in NCL.
    x = x_ref[0].astype(jnp.float32)
    scale = sb_ref[:, 0:1]
    bias = sb_ref[:, 1:2]
    o_ref[0] = jnp.maximum(x * scale + bias, 0.0).astype(o_ref.dtype)


# ----------------------------------------------------------------------------
# Tiling helpers
# ----------------------------------------------------------------------------
_VMEM_TILE_BUDGET = 40 << 20      # keep pipeline buffers well under v7x's 64 MiB
_VMEM_LIMIT_CAP = 56 << 20        # scoped-VMEM request cap (safe on all gens)


def _pick_length_tile(l_padded, target, n_batch):
    """Pick TL: a 128-multiple divisor of l_padded, as close to `target` as
    possible while keeping >= 4 grid steps when possible (v7x has 2 TCs)."""
    m = l_padded // 128
    cands = sorted(128 * d for d in range(1, m + 1) if m % d == 0)
    target = max(128, target - target % 128)
    fits = [t for t in cands if t <= target] or [128]
    for min_steps in (4, 2):
        ok = [t for t in fits if n_batch * (l_padded // t) >= min_steps]
        if ok:
            return max(ok)
    return max(fits)


# ----------------------------------------------------------------------------
# Wrapper (parameter folding + tiling + pallas_call)
# ----------------------------------------------------------------------------
def bottleneck_block(x, params, *, disable_conv=False, eps=1e-5,
                     matmul_dtype=jnp.bfloat16, out_dtype=None,
                     length_tile=1024):
    """x: (N, C_in, L) in NCL layout, same as the PyTorch module.

    Eval-mode BN is folded to per-channel scale/bias (f32 BN math inside the
    kernel); the matmul runs in `matmul_dtype` (bf16 default) with f32
    accumulation.  Output dtype defaults to the input dtype.
    """
    N, C_in, L = x.shape
    out_dtype = jnp.dtype(x.dtype if out_dtype is None else out_dtype)

    gamma = params["gamma"].astype(jnp.float32)
    beta = params["beta"].astype(jnp.float32)
    mean = params["running_mean"].astype(jnp.float32)
    var = params["running_var"].astype(jnp.float32)

    # Fold eval-mode BN into per-channel scale/bias; pack into one operand.
    scale = gamma / jnp.sqrt(var + eps)          # (C_in,)
    bias = beta - mean * scale                   # (C_in,)
    sb = jnp.stack([scale, bias], axis=1)        # (C_in, 2), f32

    if disable_conv:
        kernel = _bn_relu_kernel
        w = None
        C_res = C_in
        w_bytes = 0
    else:
        kernel = _bn_relu_conv_kernel
        # Cast the conv weight ONCE here (not per grid step inside the kernel).
        w = params["conv_weight"][:, :, 0].astype(matmul_dtype)   # (C_out, C_in)
        C_res = w.shape[0]
        w_bytes = C_res * C_in * jnp.dtype(matmul_dtype).itemsize

    # Pad ragged L up to a multiple of 128 (lane-dense stores, L pipelining).
    Lp = ((L + 127) // 128) * 128
    x_p = jnp.pad(x, ((0, 0), (0, 0), (0, Lp - L))) if Lp != L else x

    in_bytes = jnp.dtype(x.dtype).itemsize
    out_bytes = out_dtype.itemsize

    def _need(tl):
        # double-buffered x + out blocks, single-buffered weight + sb.
        return (2 * C_in * tl * in_bytes + 2 * C_res * tl * out_bytes
                + w_bytes + C_in * 2 * 4)

    TL = _pick_length_tile(Lp, length_tile, N)
    while TL > 128 and _need(TL) > _VMEM_TILE_BUDGET:
        TL = _pick_length_tile(Lp, TL - 128, N)

    grid = (N, Lp // TL)
    vmem_limit = int(min(2 * _need(TL) + (8 << 20), _VMEM_LIMIT_CAP))
    cparams = pltpu.CompilerParams(
        dimension_semantics=("parallel", "parallel"),
        vmem_limit_bytes=vmem_limit)

    x_spec = pl.BlockSpec((1, C_in, TL), lambda n, l: (n, 0, l))
    out_spec = pl.BlockSpec((1, C_res, TL), lambda n, l: (n, 0, l))

    def run(single_buffer_invariants):
        if single_buffer_invariants:
            # Grid-invariant operands: one VMEM buffer is enough.
            def inv(shape, imap):
                return pl.BlockSpec(shape, imap, pipeline_mode=pl.Buffered(1))
        else:
            inv = pl.BlockSpec
        in_specs = [x_spec, inv((C_in, 2), lambda n, l: (0, 0))]
        args = [x_p, sb]
        if not disable_conv:
            in_specs.append(inv((C_res, C_in), lambda n, l: (0, 0)))
            args.append(w)
        return pl.pallas_call(
            kernel,
            out_shape=jax.ShapeDtypeStruct((N, C_res, Lp), out_dtype),
            grid=grid,
            in_specs=in_specs,
            out_specs=out_spec,
            compiler_params=cparams,
        )(*args)

    try:
        out = run(True)
    except Exception:
        # pl.Buffered(1) / pipeline_mode unsupported on this jax: default bufs.
        out = run(False)

    return out[:, :, :L] if Lp != L else out


# ----------------------------------------------------------------------------
# Pure-JAX reference for verification (f32)
# ----------------------------------------------------------------------------
def bottleneck_block_ref(x, params, *, disable_conv=False, eps=1e-5):
    x = x.astype(jnp.float32)
    gamma = params["gamma"][None, :, None]
    beta = params["beta"][None, :, None]
    mean = params["running_mean"][None, :, None]
    var = params["running_var"][None, :, None]
    h = jnp.maximum(gamma * (x - mean) / jnp.sqrt(var + eps) + beta, 0.0)
    if disable_conv:
        return h
    w = params["conv_weight"][:, :, 0]                        # (C_out, C_in)
    return jnp.einsum("oc,ncl->nol", w, h)


# ----------------------------------------------------------------------------
# Main
# ----------------------------------------------------------------------------
if __name__ == "__main__":
    key = jax.random.PRNGKey(0)
    N, C_in, L = 2, 4, 16
    C_out = 8

    k_x, k_g, k_b, k_m, k_v, k_w = jax.random.split(key, 6)
    x = jax.random.normal(k_x, (N, C_in, L), dtype=jnp.float32)

    params = {
        "gamma": jax.random.normal(k_g, (C_in,), dtype=jnp.float32) * 0.1 + 1.0,
        "beta": jax.random.normal(k_b, (C_in,), dtype=jnp.float32) * 0.1,
        "running_mean": jax.random.normal(k_m, (C_in,), dtype=jnp.float32) * 0.1,
        "running_var": jax.random.uniform(k_v, (C_in,), dtype=jnp.float32,
                                          minval=0.5, maxval=1.5),
        "conv_weight": jax.random.normal(k_w, (C_out, C_in, 1), dtype=jnp.float32)
                       * (1.0 / (C_in ** 0.5)),
    }

    # 1) f32 IO + f32 matmul: strict check (ragged L=16 padded to 128, sliced).
    out = jax.block_until_ready(
        bottleneck_block(x, params, matmul_dtype=jnp.float32))
    ref = bottleneck_block_ref(x, params)
    assert out.shape == (N, C_out, L) and out.dtype == jnp.float32
    assert jnp.allclose(out, ref, atol=1e-5, rtol=1e-5)

    # 2) disable_conv path (BN + ReLU only), strict.
    out2 = jax.block_until_ready(
        bottleneck_block(x, params, disable_conv=True,
                         matmul_dtype=jnp.float32))
    ref2 = bottleneck_block_ref(x, params, disable_conv=True)
    assert out2.shape == (N, C_in, L)
    assert jnp.allclose(out2, ref2, atol=1e-5, rtol=1e-5)

    # 3) bf16 in / bf16 out / bf16 MXU (defaults), tiled L (two 128 tiles).
    L2 = 256
    x2 = jax.random.normal(jax.random.fold_in(key, 7), (N, C_in, L2),
                           dtype=jnp.float32).astype(jnp.bfloat16)
    out3 = jax.block_until_ready(bottleneck_block(x2, params))
    ref3 = bottleneck_block_ref(x2, params)
    assert out3.shape == (N, C_out, L2) and out3.dtype == jnp.bfloat16
    assert jnp.allclose(out3.astype(jnp.float32), ref3, atol=5e-2, rtol=5e-2)

    # 4) ragged L (200 -> padded 256, sliced back), f32 IO, default bf16 MXU.
    L3 = 200
    x3 = jax.random.normal(jax.random.fold_in(key, 11), (N, C_in, L3),
                           dtype=jnp.float32)
    out4 = jax.block_until_ready(bottleneck_block(x3, params))
    ref4 = bottleneck_block_ref(x3, params)
    assert out4.shape == (N, C_out, L3) and out4.dtype == jnp.float32
    assert jnp.allclose(out4, ref4, atol=5e-2, rtol=5e-2)

    print("KERNEL_OK")
</pallas_src>

<mosaic_0001>
module attributes {stable_mosaic.version = 11 : i64} {
  func.func @_bn_relu_conv_kernel(%arg0: i32, %arg1: i32, %arg2: memref<1x4x128xf32, #tpu.memory_space<vmem>>, %arg3: memref<4x2xf32, #tpu.memory_space<vmem>>, %arg4: memref<8x4xf32, #tpu.memory_space<vmem>>, %arg5: memref<1x8x128xf32, #tpu.memory_space<vmem>>) attributes {dimension_semantics = [#tpu.dimension_semantics<parallel>, #tpu.dimension_semantics<parallel>], iteration_bounds = array<i64: 2, 1>, scalar_prefetch = 0 : i64, scratch_operands = 0 : i64, tpu.core_type = #tpu.core_type<tc>, window_params = [{transform_indices = @transform_0, window_bounds = array<i64: 1, 4, 128>}, {pipeline_mode = #tpu.pipeline_mode<synchronous>, transform_indices = @transform_1, window_bounds = array<i64: 4, 2>}, {pipeline_mode = #tpu.pipeline_mode<synchronous>, transform_indices = @transform_2, window_bounds = array<i64: 8, 4>}, {transform_indices = @transform_3, window_bounds = array<i64: 1, 8, 128>}]} {
    %c0 = arith.constant 0 : index
    %c0_0 = arith.constant 0 : index
    %c0_1 = arith.constant 0 : index
    %0 = vector.load %arg2[%c0, %c0_0, %c0_1] : memref<1x4x128xf32, #tpu.memory_space<vmem>>, vector<1x4x128xf32>
    %1 = vector.shape_cast %0 : vector<1x4x128xf32> to vector<4x128xf32>
    %c0_2 = arith.constant 0 : index
    %c0_3 = arith.constant 0 : index
    %2 = vector.load %arg3[%c0_2, %c0_3] : memref<4x2xf32, #tpu.memory_space<vmem>>, vector<4x1xf32>
    %c0_4 = arith.constant 0 : index
    %c1 = arith.constant 1 : index
    %3 = vector.load %arg3[%c0_4, %c1] : memref<4x2xf32, #tpu.memory_space<vmem>>, vector<4x1xf32>
    %4 = vector.broadcast %2 : vector<4x1xf32> to vector<4x128xf32>
    %5 = arith.mulf %1, %4 : vector<4x128xf32>
    %6 = vector.broadcast %3 : vector<4x1xf32> to vector<4x128xf32>
    %7 = arith.addf %5, %6 : vector<4x128xf32>
    %cst = arith.constant 0.000000e+00 : f32
    %8 = vector.broadcast %cst : f32 to vector<4x128xf32>
    %9 = arith.maximumf %7, %8 : vector<4x128xf32>
    %c0_5 = arith.constant 0 : index
    %c0_6 = arith.constant 0 : index
    %10 = vector.load %arg4[%c0_5, %c0_6] : memref<8x4xf32, #tpu.memory_space<vmem>>, vector<8x4xf32>
    %cst_7 = arith.constant dense<0.000000e+00> : vector<8x128xf32>
    %11 = tpu.matmul %10, %9, %cst_7 {dimension_numbers = #tpu.dot_dimension_numbers<[1], [0], [0], [1], [0, 0, 1, 1], [], []>} : vector<8x4xf32>, vector<4x128xf32>, vector<8x128xf32> -> vector<8x128xf32>
    %c0_8 = arith.constant 0 : index
    %c0_9 = arith.constant 0 : index
    %c0_10 = arith.constant 0 : index
    %12 = vector.load %arg5[%c0_8, %c0_9, %c0_10] : memref<1x8x128xf32, #tpu.memory_space<vmem>>, vector<1x8x128xf32>
    %13 = vector.shape_cast %12 : vector<1x8x128xf32> to vector<8x128xf32>
    %14 = vector.shape_cast %11 : vector<8x128xf32> to vector<1x8x128xf32>
    tpu.vector_store %arg5[%c0_8, %c0_9, %c0_10], %14 {strides = array<i32>} : memref<1x8x128xf32, #tpu.memory_space<vmem>>, vector<1x8x128xf32>,
    return
  }
  func.func @transform_0(%arg0: i32, %arg1: i32) -> (i32, i32, i32) {
    %c0_i32 = arith.constant 0 : i32
    %c0_i32_0 = arith.constant 0 : i32
    return %arg0, %c0_i32, %arg1 : i32, i32, i32
  }
  func.func @transform_1(%arg0: i32, %arg1: i32) -> (i32, i32) {
    %c0_i32 = arith.constant 0 : i32
    %c0_i32_0 = arith.constant 0 : i32
    %c0_i32_1 = arith.constant 0 : i32
    return %c0_i32, %c0_i32_0 : i32, i32
  }
  func.func @transform_2(%arg0: i32, %arg1: i32) -> (i32, i32) {
    %c0_i32 = arith.constant 0 : i32
    %c0_i32_0 = arith.constant 0 : i32
    %c0_i32_1 = arith.constant 0 : i32
    return %c0_i32, %c0_i32_0 : i32, i32
  }
  func.func @transform_3(%arg0: i32, %arg1: i32) -> (i32, i32, i32) {
    %c0_i32 = arith.constant 0 : i32
    %c0_i32_0 = arith.constant 0 : i32
    return %arg0, %c0_i32, %arg1 : i32, i32, i32
  }
}

module attributes {stable_mosaic.version = 11 : i64} {
  func.func @_bn_relu_conv_kernel(%arg0: i32, %arg1: i32, %arg2: memref<1x4x128xf32, #tpu.memory_space<vmem>>, %arg3: memref<4x2xf32, #tpu.memory_space<vmem>>, %arg4: memref<8x4xf32, #tpu.memory_space<vmem>>, %arg5: memref<1x8x128xf32, #tpu.memory_space<vmem>>) attributes {dimension_semantics = [#tpu.dimension_semantics<parallel>, #tpu.dimension_semantics<parallel>], iteration_bounds = array<i64: 2, 1>, scalar_prefetch = 0 : i64, scratch_operands = 0 : i64, tpu.core_type = #tpu.core_type<tc>, window_params = [{transform_indices = @transform_0, window_bounds = array<i64: 1, 4, 128>}, {pipeline_mode = #tpu.pipeline_mode<synchronous>, transform_indices = @transform_1, window_bounds = array<i64: 4, 2>}, {pipeline_mode = #tpu.pipeline_mode<synchronous>, transform_indices = @transform_2, window_bounds = array<i64: 8, 4>}, {transform_indices = @transform_3, window_bounds = array<i64: 1, 8, 128>}]} {
    %c0 = arith.constant 0 : index
    %c0_0 = arith.constant 0 : index
    %c0_1 = arith.constant 0 : index
    %0 = vector.load %arg2[%c0, %c0_0, %c0_1] : memref<1x4x128xf32, #tpu.memory_space<vmem>>, vector<1x4x128xf32>
    %1 = vector.shape_cast %0 : vector<1x4x128xf32> to vector<4x128xf32>
    %c0_2 = arith.constant 0 : index
    %c0_3 = arith.constant 0 : index
    %2 = vector.load %arg3[%c0_2, %c0_3] : memref<4x2xf32, #tpu.memory_space<vmem>>, vector<4x1xf32>
    %c0_4 = arith.constant 0 : index
    %c1 = arith.constant 1 : index
    %3 = vector.load %arg3[%c0_4, %c1] : memref<4x2xf32, #tpu.memory_space<vmem>>, vector<4x1xf32>
    %4 = vector.broadcast %2 : vector<4x1xf32> to vector<4x128xf32>
    %5 = arith.mulf %1, %4 : vector<4x128xf32>
    %6 = vector.broadcast %3 : vector<4x1xf32> to vector<4x128xf32>
    %7 = arith.addf %5, %6 : vector<4x128xf32>
    %cst = arith.constant 0.000000e+00 : f32
    %8 = vector.broadcast %cst : f32 to vector<4x128xf32>
    %9 = arith.maximumf %7, %8 : vector<4x128xf32>
    %c0_5 = arith.constant 0 : index
    %c0_6 = arith.constant 0 : index
    %10 = vector.load %arg4[%c0_5, %c0_6] : memref<8x4xf32, #tpu.memory_space<vmem>>, vector<8x4xf32>
    %cst_7 = arith.constant dense<0.000000e+00> : vector<8x128xf32>
    %11 = tpu.matmul %10, %9, %cst_7 {dimension_numbers = #tpu.dot_dimension_numbers<[1], [0], [0], [1], [0, 0, 1, 1], [], []>} : vector<8x4xf32>, vector<4x128xf32>, vector<8x128xf32> -> vector<8x128xf32>
    %c0_8 = arith.constant 0 : index
    %c0_9 = arith.constant 0 : index
    %c0_10 = arith.constant 0 : index
    %12 = vector.load %arg5[%c0_8, %c0_9, %c0_10] : memref<1x8x128xf32, #tpu.memory_space<vmem>>, vector<1x8x128xf32>
    %13 = vector.shape_cast %12 : vector<1x8x128xf32> to vector<8x128xf32>
    %14 = vector.shape_cast %11 : vector<8x128xf32> to vector<1x8x128xf32>
    tpu.vector_store %arg5[%c0_8, %c0_9, %c0_10], %14 {strides = array<i32>} : memref<1x8x128xf32, #tpu.memory_space<vmem>>, vector<1x8x128xf32>,
    return
  }
  func.func @transform_0(%arg0: i32, %arg1: i32) -> (i32, i32, i32) {
    %c0_i32 = arith.constant 0 : i32
    %c0_i32_0 = arith.constant 0 : i32
    return %arg0, %c0_i32, %arg1 : i32, i32, i32
  }
  func.func @transform_1(%arg0: i32, %arg1: i32) -> (i32, i32) {
    %c0_i32 = arith.constant 0 : i32
    %c0_i32_0 = arith.constant 0 : i32
    %c0_i32_1 = arith.constant 0 : i32
    return %c0_i32, %c0_i32_0 : i32, i32
  }
  func.func @transform_2(%arg0: i32, %arg1: i32) -> (i32, i32) {
    %c0_i32 = arith.constant 0 : i32
    %c0_i32_0 = arith.constant 0 : i32
    %c0_i32_1 = arith.constant 0 : i32
    return %c0_i32, %c0_i32_0 : i32, i32
  }
  func.func @transform_3(%arg0: i32, %arg1: i32) -> (i32, i32, i32) {
    %c0_i32 = arith.constant 0 : i32
    %c0_i32_0 = arith.constant 0 : i32
    return %arg0, %c0_i32, %arg1 : i32, i32, i32
  }
}

</mosaic_0001>

<llo_original>
// kernel: tpu_custom_call.1
$region0: #{tpu_custom_call.1}
  #allocation0 [shape = 'u32[]', space=smem, size = 0x4, offset = 0x4, fixed_abs, tag = 'smem constant byte address 0x4 - core index']
  #allocation1 [shape = 'u32[144,128]{1,0:T(1,128)}', space=vmem, size = 0x12000, scoped, tag = 'internal scratch']
  %s0 = inlined_call_operand.vmem [shape: f32[2,4,128], index: 0, kind: input, shape index: {}]
  %s1 = inlined_call_operand.vmem [shape: f32[4,2], index: 1, kind: input, shape index: {}]
  %s2 = inlined_call_operand.vmem [shape: f32[8,4], index: 2, kind: input, shape index: {}]
  %s3 = inlined_call_operand.hbm [shape: f32[2,8,128], index: 3, kind: output, shape index: {}]
  %s4 = sld [smem:[#allocation0]]
  $region45: #{tpu_custom_call.1} parent=0
    _
  %s6 = ssub.s32 1, %s4
  %s7 = scalar_select 0, %s6, %s4
  $region1: #{tpu_custom_call.1} parent=0
    #allocation2 [shape = 'u8[8192]{0}', space=vmem, size = 0x2000, scoped, tag = 'output window, operand 0']
    #allocation3 [shape = 's32[2]{0}', space=sflag, size = 0x8, scoped, tag = 'scoped memory for tpu_custom_call.1']
    %8 = vsyncpa [#allocation3], 0
    %s9 = scalar_lea.sflag [#allocation3], 1
    %10 = vsyncpa %s9, 0
    loop: start=0, step=1, limit=4
    $region2: #{tpu_custom_call.1} parent=1 // loop_pre_header
      _
    $region3: #{tpu_custom_call.1} parent=1 // loop_header
      %s12 = sphi 0, %s16
      %p13 = scmp.ge.s32.totalorder %s12, 4
      %s19 = sphi 0, %s31
      %s20 = sphi 0, %s27
      %s21 = sphi 0, %s19
      %s22 = sphi 0, %s20
      %s23 = sphi 0, %s21
      %s24 = sphi 0, %s22
      %s36 = sphi 0, %s38
      %s39 = sphi 0, %s36
      %s40 = sphi 0, %s39
      %s56 = sphi 0, %s40
      %s60 = sphi 0, %s60
      %s62 = sphi 0, %s60
      %s63 = sphi 0, %s62
      %s77 = sphi 0, %s63
      %s81 = sphi 0, %s81
      %s83 = sphi 0, %s81
      %s84 = sphi 0, %s83
      %s98 = sphi 0, %s84
      %s106 = sphi 0, %s108
      %s109 = sphi 0, %s106
      %s110 = sphi 0, %s109
      %s126 = sphi 0, %s110
    $region4: #{tpu_custom_call.1} parent=1 // loop_header_branch
      %15 = sbr.rel (%p13) target = $region8
    $region5: #{tpu_custom_call.1} parent=1 // loop_body
      %s17 = ssub.s32 %s12, 1
      %s18 = ssub.s32 %s12, 2
      %s25 = sadd.s32 1, %s20
      %p26 = scmp.ge.s32.totalorder %s25, 1
      %s27 = scalar_select %p26, 0, %s25
      %s28 = sadd.s32 1, %s19
      %s29 = scalar_select %p26, %s28, %s19
      %p30 = scmp.ge.s32.totalorder %s29, 2
      %s31 = scalar_select %p30, 0, %s29
      %s32 = ssub.s32 %s19, %s31
      %s33 = ssub.s32 %s20, %s27
      %s34 = sor.u32 %s32, %s33
      %p35 = scmp.eq.s32.totalorder %s34, 0
      %s37 = sadd.s32 %s36, 1
      %s38 = scalar_select %p35, %s36, %s37
      %p41 = pneg %p35
      %p42 = scmp.eq.s32.totalorder %s12, 1
      %p43 = por %p41, %p42
      %p44 = scmp.ne.s32.totalorder %s36, %s39
      %p45 = scmp.eq.s32.totalorder %s12, 0
      %p46 = por %p44, %p45
      %p47 = scmp.ne.s32.totalorder %s36, %s39
      %p48 = scmp.eq.s32.totalorder %s17, 1
      %p49 = por %p47, %p48
      %p50 = scmp.ne.s32.totalorder %s39, %s40
      %p51 = scmp.eq.s32.totalorder %s17, 0
      %p52 = por %p50, %p51
      %p53 = scmp.ne.s32.totalorder %s39, %s40
      %p54 = scmp.eq.s32.totalorder %s18, 1
      %p55 = por %p53, %p54
      %p57 = scmp.ne.s32.totalorder %s40, %s56
      %p58 = scmp.eq.s32.totalorder %s18, 0
      %p59 = por %p57, %p58
      %s61 = sadd.s32 %s60, 1
      %p64 = scmp.eq.s32.totalorder %s12, 1
      %p65 = scmp.ne.s32.totalorder %s60, %s62
      %p66 = scmp.eq.s32.totalorder %s12, 0
      %p67 = por %p65, %p66
      %p68 = scmp.ne.s32.totalorder %s60, %s62
      %p69 = scmp.eq.s32.totalorder %s17, 1
      %p70 = por %p68, %p69
      %p71 = scmp.ne.s32.totalorder %s62, %s63
      %p72 = scmp.eq.s32.totalorder %s17, 0
      %p73 = por %p71, %p72
      %p74 = scmp.ne.s32.totalorder %s62, %s63
      %p75 = scmp.eq.s32.totalorder %s18, 1
      %p76 = por %p74, %p75
      %p78 = scmp.ne.s32.totalorder %s63, %s77
      %p79 = scmp.eq.s32.totalorder %s18, 0
      %p80 = por %p78, %p79
      %s82 = sadd.s32 %s81, 1
      %p85 = scmp.eq.s32.totalorder %s12, 1
      %p86 = scmp.ne.s32.totalorder %s81, %s83
      %p87 = scmp.eq.s32.totalorder %s12, 0
      %p88 = por %p86, %p87
      %p89 = scmp.ne.s32.totalorder %s81, %s83
      %p90 = scmp.eq.s32.totalorder %s17, 1
      %p91 = por %p89, %p90
      %p92 = scmp.ne.s32.totalorder %s83, %s84
      %p93 = scmp.eq.s32.totalorder %s17, 0
      %p94 = por %p92, %p93
      %p95 = scmp.ne.s32.totalorder %s83, %s84
      %p96 = scmp.eq.s32.totalorder %s18, 1
      %p97 = por %p95, %p96
      %p99 = scmp.ne.s32.totalorder %s84, %s98
      %p100 = scmp.eq.s32.totalorder %s18, 0
      %p101 = por %p99, %p100
      %s102 = ssub.s32 %s19, %s31
      %s103 = ssub.s32 %s20, %s27
      %s104 = sor.u32 %s102, %s103
      %p105 = scmp.eq.s32.totalorder %s104, 0
      %s107 = sadd.s32 %s106, 1
      %s108 = scalar_select %p105, %s106, %s107
      %p111 = pneg %p105
      %p112 = scmp.eq.s32.totalorder %s12, 1
      %p113 = por %p111, %p112
      %p114 = scmp.ne.s32.totalorder %s106, %s109
      %p115 = scmp.eq.s32.totalorder %s12, 0
      %p116 = por %p114, %p115
      %p117 = scmp.ne.s32.totalorder %s106, %s109
      %p118 = scmp.eq.s32.totalorder %s17, 1
      %p119 = por %p117, %p118
      %p120 = scmp.ne.s32.totalorder %s109, %s110
      %p121 = scmp.eq.s32.totalorder %s17, 0
      %p122 = por %p120, %p121
      %p123 = scmp.ne.s32.totalorder %s109, %s110
      %p124 = scmp.eq.s32.totalorder %s18, 1
      %p125 = por %p123, %p124
      %p127 = scmp.ne.s32.totalorder %s110, %s126
      %p128 = scmp.eq.s32.totalorder %s18, 0
      %p129 = por %p127, %p128
      %p130 = scmp.le.s32.totalorder 1, %s12
      %p131 = scmp.lt.s32.totalorder %s12, 3
      %p132 = pnand %p130, %p131
      %p133 = pneg %p132
      // Predicated region
      $region9: #{tpu_custom_call.1} parent=5 // pred_check
        _
      $region10: #{tpu_custom_call.1} parent=5 // pred_check_branch
        %135 = sbr.rel (%p132) target = $region12
      $region11: #{tpu_custom_call.1} parent=5 // pred_region
        %s136 = ssub.s32 %s12, 1
        // Predicated region
        $region13: #{tpu_custom_call.1} parent=11 // pred_check
          %p137 = pneg %p73
        $region14: #{tpu_custom_call.1} parent=11 // pred_check_branch
          %139 = sbr.rel (%p137) target = $region16
        $region15: #{tpu_custom_call.1} parent=11 // pred_region
          _
        $region16: #{tpu_custom_call.1} parent=11 // pred_fallthru
          _
        // Predicated region
        $region17: #{tpu_custom_call.1} parent=11 // pred_check
          %p140 = pneg %p94
        $region18: #{tpu_custom_call.1} parent=11 // pred_check_branch
          %142 = sbr.rel (%p140) target = $region20
        $region19: #{tpu_custom_call.1} parent=11 // pred_region
          _
        $region20: #{tpu_custom_call.1} parent=11 // pred_fallthru
          _
      $region12: #{tpu_custom_call.1} parent=5 // pred_fallthru
        _
      %p143 = scmp.lt.s32.totalorder %s12, 2
      // Predicated region
      $region21: #{tpu_custom_call.1} parent=5 // pred_check
        %p144 = pneg %p143
      $region22: #{tpu_custom_call.1} parent=5 // pred_check_branch
        %146 = sbr.rel (%p144) target = $region24
      $region23: #{tpu_custom_call.1} parent=5 // pred_region
        // Predicated region
        $region25: #{tpu_custom_call.1} parent=23 // pred_check
          %p147 = pneg %p46
        $region26: #{tpu_custom_call.1} parent=23 // pred_check_branch
          %149 = sbr.rel (%p147) target = $region28
        $region27: #{tpu_custom_call.1} parent=23 // pred_region
          %p150 = scmp.lt.s32.totalorder %s19, 1
          %s151 = scalar_select %p150, %s19, 1
          %p152 = scmp.lt.s32.totalorder %s20, 0
          %s153 = scalar_select %p152, %s20, 0
          %s154 = sadd.s32 %s153, %s151
          %s155 = smul.addr %s154, 4
          %s156 = scalar_lea.vmem %s0, %s155
        $region28: #{tpu_custom_call.1} parent=23 // pred_fallthru
          _
      $region24: #{tpu_custom_call.1} parent=5 // pred_fallthru
        _
      %p157 = scmp.le.s32.totalorder 1, %s12
      %p158 = scmp.lt.s32.totalorder %s12, 3
      %p159 = pnand %p157, %p158
      %p160 = pneg %p159
      // Predicated region
      $region29: #{tpu_custom_call.1} parent=5 // pred_check
        _
      $region30: #{tpu_custom_call.1} parent=5 // pred_check_branch
        %162 = sbr.rel (%p159) target = $region32
      $region31: #{tpu_custom_call.1} parent=5 // pred_region
        %s163 = ssub.s32 %s12, 1
        %p164 = scmp.lt.s32.totalorder %s21, 1
        %s165 = scalar_select %p164, %s21, 1
        %p166 = scmp.lt.s32.totalorder %s22, 0
        %s167 = scalar_select %p166, %s22, 0
        %s168 = sadd.s32 %s167, %s165
        %s169 = smul.addr %s168, 4
        %s170 = scalar_lea.vmem %s0, %s169
        %p171 = pneg %p52
        %p172 = pneg %p49
        %p173 = pneg %p73
        %p174 = pneg %p70
        %p175 = pneg %p94
        %p176 = pneg %p91
        %p177 = pneg %p122
        %p178 = pneg %p119
        %s179 = sand.u32 %s109, 1
        %s180 = scalar_lea.sflag [#allocation3], %s179
        %s181 = sand.u32 %s109, 1
        %s182 = smul.addr %s181, 8
        %s183 = scalar_lea.vmem [#allocation2], %s182
        %p184 = scmp.lt.s32.totalorder %s21, 1
        %s185 = scalar_select %p184, %s21, 1
        %p186 = scmp.lt.s32.totalorder %s22, 0
        %s187 = scalar_select %p186, %s22, 0
        %s188 = sadd.s32 %s187, %s185
        %s189 = smul.addr %s188, 4
        %s190 = scalar_lea.vmem %s0, %s189
        %v191 = vld [vmem:[%s190] sm:$0xf]
        %v192 = vld [vmem:[%s1] sm:$0xf]
        %194 = vset.pattern.permute.xlu0 0
        %195 = vperm.xlu0 %194, %v192
        %v196 = vpop.permute.xlu0 %195
        %v198 = vmul.f32 %v191, %v196
        %199 = vset.pattern.permute.xlu0 1
        %200 = vperm.xlu0 %199, %v192
        %v201 = vpop.permute.xlu0 %200
        %v203 = vadd.f32 %v198, %v201
        %v204 = vmax.f32 %v203, 0.0
        %v205 = vld [vmem:[%s2] sm:$0xff]
        %vm206 = vcmask 31744
        %v208 = vsel %vm206, %v205, 0
        %vm210 = vcmask 1043456
        %v212 = vsel %vm210, %v204, 0
        %214 = vmatprep.subr.mxu0 0.0
        %215 = vmatpush1.msra.mxu0 %v212
        %216 = vmatprep.subr.mxu0 0.0
        %217 = vmatpush1.msra.mxu0 0.0
        %218 = vmatprep.subr.mxu0 0.0
        %219 = vmatpush1.msra.mxu0 0.0
        %220 = vmatprep.subr.mxu0 0.0
        %221 = vmatpush1.msra.mxu0 0.0
        %222 = vmatprep.subr.mxu0 0.0
        %223 = vmatpush1.msra.mxu0 0.0
        %224 = vmatprep.subr.mxu0 0.0
        %225 = vmatpush1.msra.mxu0 0.0
        %226 = vmatprep.subr.mxu0 0.0
        %227 = vmatpush1.msra.mxu0 0.0
        %228 = vmatprep.subr.mxu0 0.0
        %229 = vmatpush1.msra.mxu0 0.0
        %230 = vmatprep.subr.mxu0 0.0
        %231 = vmatpush1.msra.mxu0 0.0
        %232 = vmatprep.subr.mxu0 0.0
        %233 = vmatpush1.msra.mxu0 0.0
        %234 = vmatprep.subr.mxu0 0.0
        %235 = vmatpush1.msra.mxu0 0.0
        %236 = vmatprep.subr.mxu0 0.0
        %237 = vmatpush1.msra.mxu0 0.0
        %238 = vmatprep.subr.mxu0 0.0
        %239 = vmatpush1.msra.mxu0 0.0
        %240 = vmatprep.subr.mxu0 0.0
        %241 = vmatpush1.msra.mxu0 0.0
        %242 = vmatprep.subr.mxu0 0.0
        %243 = vmatpush1.msra.mxu0 0.0
        %244 = vmatprep.subr.mxu0 0.0
        %245 = vmatpush1.msra.mxu0 0.0
        %246 = vmatprep.subr.mxu0 0.0
        %247 = vmatpush1.msra.mxu0 0.0
        %248 = vmatprep.subr.mxu0 0.0
        %249 = vmatpush1.msra.mxu0 0.0
        %250 = vmatprep.subr.mxu0 0.0
        %251 = vmatpush1.msra.mxu0 0.0
        %252 = vmatprep.subr.mxu0 0.0
        %253 = vmatpush1.msra.mxu0 0.0
        %254 = vmatprep.subr.mxu0 0.0
        %255 = vmatpush1.msra.mxu0 0.0
        %256 = vmatprep.subr.mxu0 0.0
        %257 = vmatpush1.msra.mxu0 0.0
        %258 = vmatprep.subr.mxu0 0.0
        %259 = vmatpush1.msra.mxu0 0.0
        %260 = vmatprep.subr.mxu0 0.0
        %261 = vmatpush1.msra.mxu0 0.0
        %262 = vmatprep.subr.mxu0 0.0
        %263 = vmatpush1.msra.mxu0 0.0
        %264 = vmatprep.subr.mxu0 0.0
        %265 = vmatpush1.msra.mxu0 0.0
        %266 = vmatprep.subr.mxu0 0.0
        %267 = vmatpush1.msra.mxu0 0.0
        %268 = vmatprep.subr.mxu0 0.0
        %269 = vmatpush1.msra.mxu0 0.0
        %270 = vmatprep.subr.mxu0 0.0
        %271 = vmatpush1.msra.mxu0 0.0
        %272 = vmatprep.subr.mxu0 0.0
        %273 = vmatpush1.msra.mxu0 0.0
        %274 = vmatprep.subr.mxu0 0.0
        %275 = vmatpush1.msra.mxu0 0.0
        %276 = vmatprep.subr.mxu0 0.0
        %277 = vmatpush1.msra.mxu0 0.0
        %278 = vmatprep.mubr.f32.mxu0 0.0
        %279 = vmatmul.mubr.f32.gmra.mrb[0].mxu0 %v208
        %v280 = vpop.f32.mrb[0].mxu0
        %v281 = vadd.f32 0.0, %v280
        %v282 = vpop.f32.mrb[0].mxu0
        %283 = vdwg.mxu0
        %284 = vst [vmem:[%s183] sm:$0xff] %v281
        %s285 = sand.u32 %s109, 1
        %s286 = scalar_lea.sflag [#allocation3], %s285
        %s287 = sand.u32 %s109, 1
        %s288 = smul.addr %s287, 8
        %s289 = scalar_lea.vmem [#allocation2], %s288
        // Predicated region
        $region33: #{tpu_custom_call.1} parent=31 // pred_check
          %p290 = pneg %p119
        $region34: #{tpu_custom_call.1} parent=31 // pred_check_branch
          %292 = sbr.rel (%p290) target = $region36
        $region35: #{tpu_custom_call.1} parent=31 // pred_region
          %s294 = ssub.s32 128, 128
          %295 = vsyncadd %s286, %s294
          %s296 = sadd.s32 %s22, %s21
          %s297 = smul.addr %s296, 128
          %s298 = scalar_lea.hbm %s3, %s297
          %s300 = sshll.u32 %s289, 4
          %s301 = int_to_ptr.vmem [resolvable:$true] %s300
          %303 = dma.vmem_to_hbm [thread:$0]  %s301, 128, %s298, %s286
        $region36: #{tpu_custom_call.1} parent=31 // pred_fallthru
          _
      $region32: #{tpu_custom_call.1} parent=5 // pred_fallthru
        _
      %p304 = scmp.le.s32.totalorder 2, %s12
      // Predicated region
      $region37: #{tpu_custom_call.1} parent=5 // pred_check
        %p305 = pneg %p304
      $region38: #{tpu_custom_call.1} parent=5 // pred_check_branch
        %307 = sbr.rel (%p305) target = $region40
      $region39: #{tpu_custom_call.1} parent=5 // pred_region
        %s308 = ssub.s32 %s12, 2
        // Predicated region
        $region41: #{tpu_custom_call.1} parent=39 // pred_check
          %p309 = pneg %p125
        $region42: #{tpu_custom_call.1} parent=39 // pred_check_branch
          %311 = sbr.rel (%p309) target = $region44
        $region43: #{tpu_custom_call.1} parent=39 // pred_region
          %s312 = sand.u32 %s110, 1
          %s313 = scalar_lea.sflag [#allocation3], %s312
          %s314 = sand.u32 %s110, 1
          %s315 = smul.addr %s314, 8
          %s316 = scalar_lea.vmem [#allocation2], %s315
          %317 = dma.done %s313, 128
        $region44: #{tpu_custom_call.1} parent=39 // pred_fallthru
          _
      $region40: #{tpu_custom_call.1} parent=5 // pred_fallthru
        _
    $region6: #{tpu_custom_call.1} parent=1 // loop_footer
      %s16 = sadd.s32 1, %s12
    $region7: #{tpu_custom_call.1} parent=1 // loop_footer_branch
      %11 = sbr.rel target = $region3
    $region8: #{tpu_custom_call.1} parent=1 // loop_exit
      _
    %318 = vsyncpa [#allocation3], 1
    %s319 = scalar_lea.sflag [#allocation3], 1
    %320 = vsyncpa %s319, 1

// kernel: tpu_custom_call.1
$region0: #{tpu_custom_call.1}
  #allocation0 [shape = 'u32[]', space=smem, size = 0x4, offset = 0x4, fixed_abs, tag = 'smem constant byte address 0x4 - core index']
  #allocation1 [shape = 'u32[144,128]{1,0:T(1,128)}', space=vmem, size = 0x12000, scoped, tag = 'internal scratch']
  %s0 = inlined_call_operand.vmem [shape: f32[2,4,128], index: 0, kind: input, shape index: {}]
  %s1 = inlined_call_operand.vmem [shape: f32[4,2], index: 1, kind: input, shape index: {}]
  %s2 = inlined_call_operand.vmem [shape: f32[8,4], index: 2, kind: input, shape index: {}]
  %s3 = inlined_call_operand.hbm [shape: f32[2,8,128], index: 3, kind: output, shape index: {}]
  %s4 = sld [smem:[#allocation0]]
  $region45: #{tpu_custom_call.1} parent=0
    _
  %s6 = ssub.s32 1, %s4
  %s7 = scalar_select 0, %s6, %s4
  $region1: #{tpu_custom_call.1} parent=0
    #allocation2 [shape = 'u8[8192]{0}', space=vmem, size = 0x2000, scoped, tag = 'output window, operand 0']
    #allocation3 [shape = 's32[2]{0}', space=sflag, size = 0x8, scoped, tag = 'scoped memory for tpu_custom_call.1']
    %8 = vsyncpa [#allocation3], 0
    %s9 = scalar_lea.sflag [#allocation3], 1
    %10 = vsyncpa %s9, 0
    loop: start=0, step=1, limit=4
    $region2: #{tpu_custom_call.1} parent=1 // loop_pre_header
      _
    $region3: #{tpu_custom_call.1} parent=1 // loop_header
      %s12 = sphi 0, %s16
      %p13 = scmp.ge.s32.totalorder %s12, 4
      %s19 = sphi 0, %s31
      %s20 = sphi 0, %s27
      %s21 = sphi 0, %s19
      %s22 = sphi 0, %s20
      %s23 = sphi 0, %s21
      %s24 = sphi 0, %s22
      %s36 = sphi 0, %s38
      %s39 = sphi 0, %s36
      %s40 = sphi 0, %s39
      %s56 = sphi 0, %s40
      %s60 = sphi 0, %s60
      %s62 = sphi 0, %s60
      %s63 = sphi 0, %s62
      %s77 = sphi 0, %s63
      %s81 = sphi 0, %s81
      %s83 = sphi 0, %s81
      %s84 = sphi 0, %s83
      %s98 = sphi 0, %s84
      %s106 = sphi 0, %s108
      %s109 = sphi 0, %s106
      %s110 = sphi 0, %s109
      %s126 = sphi 0, %s110
    $region4: #{tpu_custom_call.1} parent=1 // loop_header_branch
      %15 = sbr.rel (%p13) target = $region8
    $region5: #{tpu_custom_call.1} parent=1 // loop_body
      %s17 = ssub.s32 %s12, 1
      %s18 = ssub.s32 %s12, 2
      %s25 = sadd.s32 1, %s20
      %p26 = scmp.ge.s32.totalorder %s25, 1
      %s27 = scalar_select %p26, 0, %s25
      %s28 = sadd.s32 1, %s19
      %s29 = scalar_select %p26, %s28, %s19
      %p30 = scmp.ge.s32.totalorder %s29, 2
      %s31 = scalar_select %p30, 0, %s29
      %s32 = ssub.s32 %s19, %s31
      %s33 = ssub.s32 %s20, %s27
      %s34 = sor.u32 %s32, %s33
      %p35 = scmp.eq.s32.totalorder %s34, 0
      %s37 = sadd.s32 %s36, 1
      %s38 = scalar_select %p35, %s36, %s37
      %p41 = pneg %p35
      %p42 = scmp.eq.s32.totalorder %s12, 1
      %p43 = por %p41, %p42
      %p44 = scmp.ne.s32.totalorder %s36, %s39
      %p45 = scmp.eq.s32.totalorder %s12, 0
      %p46 = por %p44, %p45
      %p47 = scmp.ne.s32.totalorder %s36, %s39
      %p48 = scmp.eq.s32.totalorder %s17, 1
      %p49 = por %p47, %p48
      %p50 = scmp.ne.s32.totalorder %s39, %s40
      %p51 = scmp.eq.s32.totalorder %s17, 0
      %p52 = por %p50, %p51
      %p53 = scmp.ne.s32.totalorder %s39, %s40
      %p54 = scmp.eq.s32.totalorder %s18, 1
      %p55 = por %p53, %p54
      %p57 = scmp.ne.s32.totalorder %s40, %s56
      %p58 = scmp.eq.s32.totalorder %s18, 0
      %p59 = por %p57, %p58
      %s61 = sadd.s32 %s60, 1
      %p64 = scmp.eq.s32.totalorder %s12, 1
      %p65 = scmp.ne.s32.totalorder %s60, %s62
      %p66 = scmp.eq.s32.totalorder %s12, 0
      %p67 = por %p65, %p66
      %p68 = scmp.ne.s32.totalorder %s60, %s62
      %p69 = scmp.eq.s32.totalorder %s17, 1
      %p70 = por %p68, %p69
      %p71 = scmp.ne.s32.totalorder %s62, %s63
      %p72 = scmp.eq.s32.totalorder %s17, 0
      %p73 = por %p71, %p72
      %p74 = scmp.ne.s32.totalorder %s62, %s63
      %p75 = scmp.eq.s32.totalorder %s18, 1
      %p76 = por %p74, %p75
      %p78 = scmp.ne.s32.totalorder %s63, %s77
      %p79 = scmp.eq.s32.totalorder %s18, 0
      %p80 = por %p78, %p79
      %s82 = sadd.s32 %s81, 1
      %p85 = scmp.eq.s32.totalorder %s12, 1
      %p86 = scmp.ne.s32.totalorder %s81, %s83
      %p87 = scmp.eq.s32.totalorder %s12, 0
      %p88 = por %p86, %p87
      %p89 = scmp.ne.s32.totalorder %s81, %s83
      %p90 = scmp.eq.s32.totalorder %s17, 1
      %p91 = por %p89, %p90
      %p92 = scmp.ne.s32.totalorder %s83, %s84
      %p93 = scmp.eq.s32.totalorder %s17, 0
      %p94 = por %p92, %p93
      %p95 = scmp.ne.s32.totalorder %s83, %s84
      %p96 = scmp.eq.s32.totalorder %s18, 1
      %p97 = por %p95, %p96
      %p99 = scmp.ne.s32.totalorder %s84, %s98
      %p100 = scmp.eq.s32.totalorder %s18, 0
      %p101 = por %p99, %p100
      %s102 = ssub.s32 %s19, %s31
      %s103 = ssub.s32 %s20, %s27
      %s104 = sor.u32 %s102, %s103
      %p105 = scmp.eq.s32.totalorder %s104, 0
      %s107 = sadd.s32 %s106, 1
      %s108 = scalar_select %p105, %s106, %s107
      %p111 = pneg %p105
      %p112 = scmp.eq.s32.totalorder %s12, 1
      %p113 = por %p111, %p112
      %p114 = scmp.ne.s32.totalorder %s106, %s109
      %p115 = scmp.eq.s32.totalorder %s12, 0
      %p116 = por %p114, %p115
      %p117 = scmp.ne.s32.totalorder %s106, %s109
      %p118 = scmp.eq.s32.totalorder %s17, 1
      %p119 = por %p117, %p118
      %p120 = scmp.ne.s32.totalorder %s109, %s110
      %p121 = scmp.eq.s32.totalorder %s17, 0
      %p122 = por %p120, %p121
      %p123 = scmp.ne.s32.totalorder %s109, %s110
      %p124 = scmp.eq.s32.totalorder %s18, 1
      %p125 = por %p123, %p124
      %p127 = scmp.ne.s32.totalorder %s110, %s126
      %p128 = scmp.eq.s32.totalorder %s18, 0
      %p129 = por %p127, %p128
      %p130 = scmp.le.s32.totalorder 1, %s12
      %p131 = scmp.lt.s32.totalorder %s12, 3
      %p132 = pnand %p130, %p131
      %p133 = pneg %p132
      // Predicated region
      $region9: #{tpu_custom_call.1} parent=5 // pred_check
        _
      $region10: #{tpu_custom_call.1} parent=5 // pred_check_branch
        %135 = sbr.rel (%p132) target = $region12
      $region11: #{tpu_custom_call.1} parent=5 // pred_region
        %s136 = ssub.s32 %s12, 1
        // Predicated region
        $region13: #{tpu_custom_call.1} parent=11 // pred_check
          %p137 = pneg %p73
        $region14: #{tpu_custom_call.1} parent=11 // pred_check_branch
          %139 = sbr.rel (%p137) target = $region16
        $region15: #{tpu_custom_call.1} parent=11 // pred_region
          _
        $region16: #{tpu_custom_call.1} parent=11 // pred_fallthru
          _
        // Predicated region
        $region17: #{tpu_custom_call.1} parent=11 // pred_check
          %p140 = pneg %p94
        $region18: #{tpu_custom_call.1} parent=11 // pred_check_branch
          %142 = sbr.rel (%p140) target = $region20
        $region19: #{tpu_custom_call.1} parent=11 // pred_region
          _
        $region20: #{tpu_custom_call.1} parent=11 // pred_fallthru
          _
      $region12: #{tpu_custom_call.1} parent=5 // pred_fallthru
        _
      %p143 = scmp.lt.s32.totalorder %s12, 2
      // Predicated region
      $region21: #{tpu_custom_call.1} parent=5 // pred_check
        %p144 = pneg %p143
      $region22: #{tpu_custom_call.1} parent=5 // pred_check_branch
        %146 = sbr.rel (%p144) target = $region24
      $region23: #{tpu_custom_call.1} parent=5 // pred_region
        // Predicated region
        $region25: #{tpu_custom_call.1} parent=23 // pred_check
          %p147 = pneg %p46
        $region26: #{tpu_custom_call.1} parent=23 // pred_check_branch
          %149 = sbr.rel (%p147) target = $region28
        $region27: #{tpu_custom_call.1} parent=23 // pred_region
          %p150 = scmp.lt.s32.totalorder %s19, 1
          %s151 = scalar_select %p150, %s19, 1
          %p152 = scmp.lt.s32.totalorder %s20, 0
          %s153 = scalar_select %p152, %s20, 0
          %s154 = sadd.s32 %s153, %s151
          %s155 = smul.addr %s154, 4
          %s156 = scalar_lea.vmem %s0, %s155
        $region28: #{tpu_custom_call.1} parent=23 // pred_fallthru
          _
      $region24: #{tpu_custom_call.1} parent=5 // pred_fallthru
        _
      %p157 = scmp.le.s32.totalorder 1, %s12
      %p158 = scmp.lt.s32.totalorder %s12, 3
      %p159 = pnand %p157, %p158
      %p160 = pneg %p159
      // Predicated region
      $region29: #{tpu_custom_call.1} parent=5 // pred_check
        _
      $region30: #{tpu_custom_call.1} parent=5 // pred_check_branch
        %162 = sbr.rel (%p159) target = $region32
      $region31: #{tpu_custom_call.1} parent=5 // pred_region
        %s163 = ssub.s32 %s12, 1
        %p164 = scmp.lt.s32.totalorder %s21, 1
        %s165 = scalar_select %p164, %s21, 1
        %p166 = scmp.lt.s32.totalorder %s22, 0
        %s167 = scalar_select %p166, %s22, 0
        %s168 = sadd.s32 %s167, %s165
        %s169 = smul.addr %s168, 4
        %s170 = scalar_lea.vmem %s0, %s169
        %p171 = pneg %p52
        %p172 = pneg %p49
        %p173 = pneg %p73
        %p174 = pneg %p70
        %p175 = pneg %p94
        %p176 = pneg %p91
        %p177 = pneg %p122
        %p178 = pneg %p119
        %s179 = sand.u32 %s109, 1
        %s180 = scalar_lea.sflag [#allocation3], %s179
        %s181 = sand.u32 %s109, 1
        %s182 = smul.addr %s181, 8
        %s183 = scalar_lea.vmem [#allocation2], %s182
        %p184 = scmp.lt.s32.totalorder %s21, 1
        %s185 = scalar_select %p184, %s21, 1
        %p186 = scmp.lt.s32.totalorder %s22, 0
        %s187 = scalar_select %p186, %s22, 0
        %s188 = sadd.s32 %s187, %s185
        %s189 = smul.addr %s188, 4
        %s190 = scalar_lea.vmem %s0, %s189
        %v191 = vld [vmem:[%s190] sm:$0xf]
        %v192 = vld [vmem:[%s1] sm:$0xf]
        %194 = vset.pattern.permute.xlu0 0
        %195 = vperm.xlu0 %194, %v192
        %v196 = vpop.permute.xlu0 %195
        %v198 = vmul.f32 %v191, %v196
        %199 = vset.pattern.permute.xlu0 1
        %200 = vperm.xlu0 %199, %v192
        %v201 = vpop.permute.xlu0 %200
        %v203 = vadd.f32 %v198, %v201
        %v204 = vmax.f32 %v203, 0.0
        %v205 = vld [vmem:[%s2] sm:$0xff]
        %vm206 = vcmask 31744
        %v208 = vsel %vm206, %v205, 0
        %vm210 = vcmask 1043456
        %v212 = vsel %vm210, %v204, 0
        %214 = vmatprep.subr.mxu0 0.0
        %215 = vmatpush1.msra.mxu0 %v212
        %216 = vmatprep.subr.mxu0 0.0
        %217 = vmatpush1.msra.mxu0 0.0
        %218 = vmatprep.subr.mxu0 0.0
        %219 = vmatpush1.msra.mxu0 0.0
        %220 = vmatprep.subr.mxu0 0.0
        %221 = vmatpush1.msra.mxu0 0.0
        %222 = vmatprep.subr.mxu0 0.0
        %223 = vmatpush1.msra.mxu0 0.0
        %224 = vmatprep.subr.mxu0 0.0
        %225 = vmatpush1.msra.mxu0 0.0
        %226 = vmatprep.subr.mxu0 0.0
        %227 = vmatpush1.msra.mxu0 0.0
        %228 = vmatprep.subr.mxu0 0.0
        %229 = vmatpush1.msra.mxu0 0.0
        %230 = vmatprep.subr.mxu0 0.0
        %231 = vmatpush1.msra.mxu0 0.0
        %232 = vmatprep.subr.mxu0 0.0
        %233 = vmatpush1.msra.mxu0 0.0
        %234 = vmatprep.subr.mxu0 0.0
        %235 = vmatpush1.msra.mxu0 0.0
        %236 = vmatprep.subr.mxu0 0.0
        %237 = vmatpush1.msra.mxu0 0.0
        %238 = vmatprep.subr.mxu0 0.0
        %239 = vmatpush1.msra.mxu0 0.0
        %240 = vmatprep.subr.mxu0 0.0
        %241 = vmatpush1.msra.mxu0 0.0
        %242 = vmatprep.subr.mxu0 0.0
        %243 = vmatpush1.msra.mxu0 0.0
        %244 = vmatprep.subr.mxu0 0.0
        %245 = vmatpush1.msra.mxu0 0.0
        %246 = vmatprep.subr.mxu0 0.0
        %247 = vmatpush1.msra.mxu0 0.0
        %248 = vmatprep.subr.mxu0 0.0
        %249 = vmatpush1.msra.mxu0 0.0
        %250 = vmatprep.subr.mxu0 0.0
        %251 = vmatpush1.msra.mxu0 0.0
        %252 = vmatprep.subr.mxu0 0.0
        %253 = vmatpush1.msra.mxu0 0.0
        %254 = vmatprep.subr.mxu0 0.0
        %255 = vmatpush1.msra.mxu0 0.0
        %256 = vmatprep.subr.mxu0 0.0
        %257 = vmatpush1.msra.mxu0 0.0
        %258 = vmatprep.subr.mxu0 0.0
        %259 = vmatpush1.msra.mxu0 0.0
        %260 = vmatprep.subr.mxu0 0.0
        %261 = vmatpush1.msra.mxu0 0.0
        %262 = vmatprep.subr.mxu0 0.0
        %263 = vmatpush1.msra.mxu0 0.0
        %264 = vmatprep.subr.mxu0 0.0
        %265 = vmatpush1.msra.mxu0 0.0
        %266 = vmatprep.subr.mxu0 0.0
        %267 = vmatpush1.msra.mxu0 0.0
        %268 = vmatprep.subr.mxu0 0.0
        %269 = vmatpush1.msra.mxu0 0.0
        %270 = vmatprep.subr.mxu0 0.0
        %271 = vmatpush1.msra.mxu0 0.0
        %272 = vmatprep.subr.mxu0 0.0
        %273 = vmatpush1.msra.mxu0 0.0
        %274 = vmatprep.subr.mxu0 0.0
        %275 = vmatpush1.msra.mxu0 0.0
        %276 = vmatprep.subr.mxu0 0.0
        %277 = vmatpush1.msra.mxu0 0.0
        %278 = vmatprep.mubr.f32.mxu0 0.0
        %279 = vmatmul.mubr.f32.gmra.mrb[0].mxu0 %v208
        %v280 = vpop.f32.mrb[0].mxu0
        %v281 = vadd.f32 0.0, %v280
        %v282 = vpop.f32.mrb[0].mxu0
        %283 = vdwg.mxu0
        %284 = vst [vmem:[%s183] sm:$0xff] %v281
        %s285 = sand.u32 %s109, 1
        %s286 = scalar_lea.sflag [#allocation3], %s285
        %s287 = sand.u32 %s109, 1
        %s288 = smul.addr %s287, 8
        %s289 = scalar_lea.vmem [#allocation2], %s288
        // Predicated region
        $region33: #{tpu_custom_call.1} parent=31 // pred_check
          %p290 = pneg %p119
        $region34: #{tpu_custom_call.1} parent=31 // pred_check_branch
          %292 = sbr.rel (%p290) target = $region36
        $region35: #{tpu_custom_call.1} parent=31 // pred_region
          %s294 = ssub.s32 128, 128
          %295 = vsyncadd %s286, %s294
          %s296 = sadd.s32 %s22, %s21
          %s297 = smul.addr %s296, 128
          %s298 = scalar_lea.hbm %s3, %s297
          %s300 = sshll.u32 %s289, 4
          %s301 = int_to_ptr.vmem [resolvable:$true] %s300
          %303 = dma.vmem_to_hbm [thread:$0]  %s301, 128, %s298, %s286
        $region36: #{tpu_custom_call.1} parent=31 // pred_fallthru
          _
      $region32: #{tpu_custom_call.1} parent=5 // pred_fallthru
        _
      %p304 = scmp.le.s32.totalorder 2, %s12
      // Predicated region
      $region37: #{tpu_custom_call.1} parent=5 // pred_check
        %p305 = pneg %p304
      $region38: #{tpu_custom_call.1} parent=5 // pred_check_branch
        %307 = sbr.rel (%p305) target = $region40
      $region39: #{tpu_custom_call.1} parent=5 // pred_region
        %s308 = ssub.s32 %s12, 2
        // Predicated region
        $region41: #{tpu_custom_call.1} parent=39 // pred_check
          %p309 = pneg %p125
        $region42: #{tpu_custom_call.1} parent=39 // pred_check_branch
          %311 = sbr.rel (%p309) target = $region44
        $region43: #{tpu_custom_call.1} parent=39 // pred_region
          %s312 = sand.u32 %s110, 1
          %s313 = scalar_lea.sflag [#allocation3], %s312
          %s314 = sand.u32 %s110, 1
          %s315 = smul.addr %s314, 8
          %s316 = scalar_lea.vmem [#allocation2], %s315
          %317 = dma.done %s313, 128
        $region44: #{tpu_custom_call.1} parent=39 // pred_fallthru
          _
      $region40: #{tpu_custom_call.1} parent=5 // pred_fallthru
        _
    $region6: #{tpu_custom_call.1} parent=1 // loop_footer
      %s16 = sadd.s32 1, %s12
    $region7: #{tpu_custom_call.1} parent=1 // loop_footer_branch
      %11 = sbr.rel target = $region3
    $region8: #{tpu_custom_call.1} parent=1 // loop_exit
      _
    %318 = vsyncpa [#allocation3], 1
    %s319 = scalar_lea.sflag [#allocation3], 1
    %320 = vsyncpa %s319, 1

</llo_original>
